<compile_context>
chip_gen: v5e
topology: v5e:2x2
jax: 0.10.0
libtpu: 0.0.40
codegen_flags: <defaults>
</compile_context>

<pallas_src>
import functools

import jax
import jax.numpy as jnp
from jax.experimental import pallas as pl
from jax.experimental.pallas import tpu as pltpu

BN_EPS = 1e-5
_LANE = 128
_SUBLANE = 8


def _round_up(n, m):
    return ((n + m - 1) // m) * m


def _tpu_vmem_limit_bytes():
    """Scoped VMEM budget derived from the chip generation (v7x: 64 MiB physical,
    v5e/v6e: 128 MiB). Conservative fallback if the query is unavailable."""
    cap = None
    try:
        info = pltpu.get_tpu_info()
        cap = getattr(info, "vmem_capacity_bytes", None)
    except Exception:
        cap = None
    if not cap:
        cap = 64 * 1024 * 1024            # conservative: v7x per-TensorCore physical
    return max(32 * 1024 * 1024, min(int(cap * 0.75), 100 * 1024 * 1024))


_VMEM_LIMIT = _tpu_vmem_limit_bytes()


# --------------------------------------------------------------------------- #
# Kernels
# --------------------------------------------------------------------------- #
def _fused_kernel(x_ref, w1_ref, b1_ref, gamma_ref, beta_ref,
                  w2_ref, b2_ref, wd_ref, bd_ref, out_ref, enc_ref):
    """Whole-batch fused path: BN batch stats are exact within the single block."""
    mm = w1_ref.dtype
    E = enc_ref.shape[-1]
    F = out_ref.shape[-1]

    x = x_ref[...].astype(mm)                               # in-kernel cast (VPU)
    h = jnp.dot(x, w1_ref[...], preferred_element_type=jnp.float32) + b1_ref[...]
    h = jnp.maximum(h, 0.0)                                 # (B, 128) f32

    # BatchNorm1d (training mode), centered form.
    mean = jnp.mean(h, axis=0, keepdims=True)               # (1, 128)
    d = h - mean
    var = jnp.mean(d * d, axis=0, keepdims=True)
    hn = d * jax.lax.rsqrt(var + BN_EPS) * gamma_ref[...] + beta_ref[...]

    enc = jnp.dot(hn.astype(mm), w2_ref[...],
                  preferred_element_type=jnp.float32) + b2_ref[...]    # (B, Ep)
    enc_ref[...] = enc[:, :E].astype(enc_ref.dtype)         # narrow (logical) store

    out = jnp.dot(jnp.maximum(enc, 0.0).astype(mm), wd_ref[...],
                  preferred_element_type=jnp.float32) + bd_ref[...]    # (B, Fp)
    out_ref[...] = out[:, :F].astype(out_ref.dtype)         # narrow (logical) store


def _stats_kernel(x_ref, w1_ref, b1_ref, hsum_ref, hss_ref, *, n_rows):
    """Pass 1 (tiled, parallel): per-tile partial sum / sum-of-squares of
    h = relu(x @ W1 + b1).  Remainder rows (>= n_rows) are masked out."""
    mm = w1_ref.dtype
    bt = x_ref.shape[0]

    x = x_ref[...].astype(mm)
    h = jnp.dot(x, w1_ref[...], preferred_element_type=jnp.float32) + b1_ref[...]
    h = jnp.maximum(h, 0.0)                                 # (bt, 128) f32

    row = pl.program_id(0) * bt + jax.lax.broadcasted_iota(jnp.int32, (bt, 1), 0)
    h = jnp.where(row < n_rows, h, 0.0)                     # exclude padded rows

    hsum_ref[...] = jnp.sum(h, axis=0, keepdims=True)[None]       # (1, 1, 128)
    hss_ref[...] = jnp.sum(h * h, axis=0, keepdims=True)[None]    # (1, 1, 128)


def _project_kernel(x_ref, w1_ref, b1_ref, scale_ref, shift_ref,
                    w2_ref, b2_ref, wd_ref, bd_ref, out_ref, enc_ref):
    """Pass 2 (tiled, parallel): recompute h, apply folded BN scale/shift, then
    run the two remaining matmuls.  OOB rows of the last tile are dropped on store."""
    mm = w1_ref.dtype
    E = enc_ref.shape[-1]
    F = out_ref.shape[-1]

    x = x_ref[...].astype(mm)
    h = jnp.dot(x, w1_ref[...], preferred_element_type=jnp.float32) + b1_ref[...]
    h = jnp.maximum(h, 0.0)                                 # (bt, 128) f32

    hn = h * scale_ref[...] + shift_ref[...]                # folded BN (f32)

    enc = jnp.dot(hn.astype(mm), w2_ref[...],
                  preferred_element_type=jnp.float32) + b2_ref[...]    # (bt, Ep)
    enc_ref[...] = enc[:, :E].astype(enc_ref.dtype)

    out = jnp.dot(jnp.maximum(enc, 0.0).astype(mm), wd_ref[...],
                  preferred_element_type=jnp.float32) + bd_ref[...]    # (bt, Fp)
    out_ref[...] = out[:, :F].astype(out_ref.dtype)


# --------------------------------------------------------------------------- #
# Parameter preparation (done ONCE, not per forward call)
# --------------------------------------------------------------------------- #
def prepare_params(params, mm_dtype=jnp.bfloat16):
    """Pre-transpose weights to (in, out), cast matmul operands to mm_dtype
    (default bf16: native MXU rate, half the weight DMA bytes), and zero-pad the
    encoder/decoder output dims to lane-dense multiples of 128 for the MXU.
    Output stores use the logical widths, so padding only affects compute."""
    H, F = params["w1"].shape          # (hidden, num_feature)
    E = params["w2"].shape[0]          # encoded_size
    Ep = _round_up(E, _LANE)
    Fp = _round_up(F, _LANE)

    w1 = params["w1"].T.astype(mm_dtype)                               # (F, H)
    b1 = params["b1"].reshape(1, H).astype(jnp.float32)
    gamma = params["gamma"].reshape(1, H).astype(jnp.float32)
    beta = params["beta"].reshape(1, H).astype(jnp.float32)

    w2 = jnp.zeros((H, Ep), mm_dtype).at[:, :E].set(params["w2"].T.astype(mm_dtype))
    b2 = jnp.zeros((1, Ep), jnp.float32).at[0, :E].set(params["b2"].astype(jnp.float32))
    wd = jnp.zeros((Ep, Fp), mm_dtype).at[:E, :F].set(params["wd"].T.astype(mm_dtype))
    bd = jnp.zeros((1, Fp), jnp.float32).at[0, :F].set(params["bd"].astype(jnp.float32))

    return {
        "w1": w1, "b1": b1, "gamma": gamma, "beta": beta,
        "w2": w2, "b2": b2, "wd": wd, "bd": bd,
        "dims": (F, H, E, Ep, Fp),
        "mm_dtype": mm_dtype,
    }


def _auto_batch_tile(B, F, E, H, Ep, Fp, x_itemsize, out_itemsize,
                     max_rows=2048, budget_bytes=None):
    """Largest batch tile (multiple of 8, up to max_rows) whose double-buffered
    streamed tiles plus in-kernel intermediates stay under the tile budget."""
    if budget_bytes is None:
        budget_bytes = min(16 * 1024 * 1024, int(0.4 * _VMEM_LIMIT))

    def tile_bytes(rows):
        stream = 2 * rows * (F * x_itemsize + F * out_itemsize + E * out_itemsize)
        interm = rows * (H + Ep + Fp) * 4
        return stream + interm

    bt = min(max_rows, _round_up(B, _SUBLANE))
    bt = max(_SUBLANE, (bt // _SUBLANE) * _SUBLANE)
    while bt > _SUBLANE and tile_bytes(bt) > budget_bytes:
        bt //= 2
        bt = max(_SUBLANE, (bt // _SUBLANE) * _SUBLANE)
    return bt


# --------------------------------------------------------------------------- #
# Forward
# --------------------------------------------------------------------------- #
def mymodel_linear_forward(x, prepared, batch_tile=None, out_dtype=None):
    """x: (B, F).  prepared: output of prepare_params().  Returns (out, enc)."""
    B, Fx = x.shape
    F, H, E, Ep, Fp = prepared["dims"]
    assert Fx == F
    mm_dtype = prepared["mm_dtype"]
    wsz = jnp.dtype(mm_dtype).itemsize
    xsz = jnp.dtype(x.dtype).itemsize
    if out_dtype is None:
        out_dtype = x.dtype
    osz = jnp.dtype(out_dtype).itemsize

    w1, b1 = prepared["w1"], prepared["b1"]
    gamma, beta = prepared["gamma"], prepared["beta"]
    w2, b2 = prepared["w2"], prepared["b2"]
    wd, bd = prepared["wd"], prepared["bd"]

    weight_bytes = (w1.size + w2.size + wd.size) * wsz \
        + (b1.size + b2.size + bd.size + gamma.size + beta.size) * 4
    flops_total = 2 * B * (F * H + H * Ep + Ep * Fp)

    if batch_tile is not None:
        batch_tile = max(_SUBLANE, (int(batch_tile) // _SUBLANE) * _SUBLANE)

    # ------------- single fused VMEM-resident block (cutoff from chip VMEM) -------
    fused_bytes = (B * (F * xsz + (H + Ep + Fp) * 4 + (F + E) * osz)
                   + weight_bytes + (2 << 20))
    want_fused = batch_tile is None or batch_tile >= B
    if want_fused and fused_bytes <= int(0.6 * _VMEM_LIMIT):
        vmem = pl.BlockSpec(memory_space=pltpu.MemorySpace.VMEM)
        cost = pl.CostEstimate(
            flops=int(flops_total), transcendentals=0,
            bytes_accessed=int(B * F * xsz + weight_bytes + B * (F + E) * osz))
        out, enc = pl.pallas_call(
            _fused_kernel,
            out_shape=(jax.ShapeDtypeStruct((B, F), out_dtype),
                       jax.ShapeDtypeStruct((B, E), out_dtype)),
            in_specs=[vmem] * 9,
            out_specs=(vmem, vmem),
            compiler_params=pltpu.CompilerParams(vmem_limit_bytes=_VMEM_LIMIT),
            cost_estimate=cost,
        )(x, w1, b1, gamma, beta, w2, b2, wd, bd)
        return out, enc

    # ------------- batch-tiled two-pass path (exact BatchNorm batch stats) --------
    if batch_tile is None or batch_tile >= B:
        batch_tile = _auto_batch_tile(B, F, E, H, Ep, Fp, xsz, osz)
    nbt = pl.cdiv(B, batch_tile)

    row2 = lambda i: (i, 0)
    row3 = lambda i: (i, 0, 0)
    const2 = lambda i: (0, 0)

    # Pass 1: per-tile partial sums / sums-of-squares (no h writeback to HBM).
    stats_cost = pl.CostEstimate(
        flops=int(2 * B * F * H + 5 * B * H), transcendentals=0,
        bytes_accessed=int(B * F * xsz + F * H * wsz + H * 4 + 2 * nbt * H * 4))
    psum, pss = pl.pallas_call(
        functools.partial(_stats_kernel, n_rows=B),
        grid=(nbt,),
        out_shape=(jax.ShapeDtypeStruct((nbt, 1, H), jnp.float32),
                   jax.ShapeDtypeStruct((nbt, 1, H), jnp.float32)),
        in_specs=[
            # x is the only truly streaming input. If its DMA is still exposed,
            # add pipeline_mode=pl.Buffered(3) here.
            pl.BlockSpec((batch_tile, F), row2),
            pl.BlockSpec((F, H), const2),
            pl.BlockSpec((1, H), const2),
        ],
        out_specs=(pl.BlockSpec((1, 1, H), row3),
                   pl.BlockSpec((1, 1, H), row3)),
        compiler_params=pltpu.CompilerParams(
            dimension_semantics=("parallel",),   # partial stats -> both TCs on v7x
            vmem_limit_bytes=_VMEM_LIMIT),
        cost_estimate=stats_cost,
    )(x, w1, b1)

    # Fold global batch statistics into a single (1,128) scale/shift — tiny XLA ops.
    inv_n = 1.0 / B
    hsum = jnp.sum(psum, axis=0).reshape(1, H)               # (1, H) f32
    hss = jnp.sum(pss, axis=0).reshape(1, H)
    mean = hsum * inv_n
    var = jnp.maximum(hss * inv_n - mean * mean, 0.0)
    scale = gamma * jax.lax.rsqrt(var + BN_EPS)
    shift = beta - mean * scale

    # Pass 2: recompute h per tile, normalize, run the remaining matmuls.
    proj_cost = pl.CostEstimate(
        flops=int(flops_total + 4 * B * H), transcendentals=0,
        bytes_accessed=int(B * F * xsz + weight_bytes + B * (F + E) * osz))
    out, enc = pl.pallas_call(
        _project_kernel,
        grid=(nbt,),
        out_shape=(jax.ShapeDtypeStruct((B, F), out_dtype),
                   jax.ShapeDtypeStruct((B, E), out_dtype)),
        in_specs=[pl.BlockSpec((batch_tile, F), row2),
                  pl.BlockSpec((F, H), const2),
                  pl.BlockSpec((1, H), const2),
                  pl.BlockSpec((1, H), const2),
                  pl.BlockSpec((1, H), const2),
                  pl.BlockSpec((H, Ep), const2),
                  pl.BlockSpec((1, Ep), const2),
                  pl.BlockSpec((Ep, Fp), const2),
                  pl.BlockSpec((1, Fp), const2)],
        out_specs=(pl.BlockSpec((batch_tile, F), row2),
                   pl.BlockSpec((batch_tile, E), row2)),
        compiler_params=pltpu.CompilerParams(
            dimension_semantics=("parallel",),   # independent tiles -> 2 TCs on v7x
            vmem_limit_bytes=_VMEM_LIMIT),
        cost_estimate=proj_cost,
    )(x, w1, b1, scale, shift, w2, b2, wd, bd)
    return out, enc


# --------------------------------------------------------------------------- #
# Reference + init (PyTorch-convention parameters)
# --------------------------------------------------------------------------- #
def init_params(key, num_feature, encoded_size, hidden_size=128):
    ks = jax.random.split(key, 8)

    def u(k, shape, fan_in):
        bound = 1.0 / jnp.sqrt(fan_in)
        return jax.random.uniform(k, shape, jnp.float32, -bound, bound)

    return {
        "w1": u(ks[0], (hidden_size, num_feature), num_feature),
        "b1": u(ks[1], (hidden_size,), num_feature),
        "gamma": 1.0 + 0.1 * jax.random.normal(ks[2], (hidden_size,), jnp.float32),
        "beta": 0.1 * jax.random.normal(ks[3], (hidden_size,), jnp.float32),
        "w2": u(ks[4], (encoded_size, hidden_size), hidden_size),
        "b2": u(ks[5], (encoded_size,), hidden_size),
        "wd": u(ks[6], (num_feature, encoded_size), encoded_size),
        "bd": u(ks[7], (num_feature,), encoded_size),
    }


def _reference_forward(x, params):
    """Pure-JAX reference mirroring the PyTorch forward (linear branch)."""
    h = jnp.maximum(x @ params["w1"].T + params["b1"], 0.0)
    mean = jnp.mean(h, axis=0, keepdims=True)
    var = jnp.mean((h - mean) ** 2, axis=0, keepdims=True)
    hn = (h - mean) / jnp.sqrt(var + BN_EPS) * params["gamma"] + params["beta"]
    enc = hn @ params["w2"].T + params["b2"]
    out = jnp.maximum(enc, 0.0) @ params["wd"].T + params["bd"]
    return out, enc


if __name__ == "__main__":
    num_feature = 32
    encoded_size = num_feature // 4          # 8

    key = jax.random.PRNGKey(0)
    kx, kp, kx2 = jax.random.split(key, 3)
    params = init_params(kp, num_feature, encoded_size)

    # 1) small batch -> single fused VMEM-resident block, f32 matmuls (exact check)
    x_small = jax.random.normal(kx, (8, num_feature), jnp.float32)
    prep_f32 = prepare_params(params, mm_dtype=jnp.float32)
    out, enc = mymodel_linear_forward(x_small, prep_f32)
    out, enc = jax.block_until_ready((out, enc))
    ref_out, ref_enc = _reference_forward(x_small, params)
    assert out.shape == (8, num_feature) and enc.shape == (8, encoded_size)
    assert jnp.allclose(out, ref_out, atol=1e-4, rtol=1e-4)
    assert jnp.allclose(enc, ref_enc, atol=1e-4, rtol=1e-4)

    # 2) tiled two-pass path with a masked remainder tile (B=200, tile=64), f32
    x_big = jax.random.normal(kx2, (200, num_feature), jnp.float32)
    out_t, enc_t = mymodel_linear_forward(x_big, prep_f32, batch_tile=64)
    out_t, enc_t = jax.block_until_ready((out_t, enc_t))
    ref_out_t, ref_enc_t = _reference_forward(x_big, params)
    assert out_t.shape == (200, num_feature) and enc_t.shape == (200, encoded_size)
    assert jnp.allclose(out_t, ref_out_t, atol=2e-3, rtol=2e-3)
    assert jnp.allclose(enc_t, ref_enc_t, atol=2e-3, rtol=2e-3)

    # 3) default bf16 matmul operands (native MXU rate), tiled path, looser tol
    prep_bf16 = prepare_params(params)       # mm_dtype defaults to bfloat16
    out_b, enc_b = mymodel_linear_forward(x_big, prep_bf16, batch_tile=64)
    out_b, enc_b = jax.block_until_ready((out_b, enc_b))
    assert jnp.allclose(out_b, ref_out_t, atol=8e-2, rtol=8e-2)
    assert jnp.allclose(enc_b, ref_enc_t, atol=8e-2, rtol=8e-2)

    print("KERNEL_OK")
</pallas_src>

<mosaic_0001>
module attributes {stable_mosaic.version = 11 : i64} {
  func.func @_fused_kernel(%arg0: memref<8x32xf32, #tpu.memory_space<vmem>>, %arg1: memref<32x128xf32, #tpu.memory_space<vmem>>, %arg2: memref<1x128xf32, #tpu.memory_space<vmem>>, %arg3: memref<1x128xf32, #tpu.memory_space<vmem>>, %arg4: memref<1x128xf32, #tpu.memory_space<vmem>>, %arg5: memref<128x128xf32, #tpu.memory_space<vmem>>, %arg6: memref<1x128xf32, #tpu.memory_space<vmem>>, %arg7: memref<128x128xf32, #tpu.memory_space<vmem>>, %arg8: memref<1x128xf32, #tpu.memory_space<vmem>>, %arg9: memref<8x32xf32, #tpu.memory_space<vmem>>, %arg10: memref<8x8xf32, #tpu.memory_space<vmem>>) attributes {dimension_semantics = [], scalar_prefetch = 0 : i64, scratch_operands = 0 : i64, tpu.core_type = #tpu.core_type<tc>} {
    %c0 = arith.constant 0 : index
    %c0_0 = arith.constant 0 : index
    %0 = vector.load %arg0[%c0, %c0_0] : memref<8x32xf32, #tpu.memory_space<vmem>>, vector<8x32xf32>
    %c0_1 = arith.constant 0 : index
    %c0_2 = arith.constant 0 : index
    %1 = vector.load %arg1[%c0_1, %c0_2] : memref<32x128xf32, #tpu.memory_space<vmem>>, vector<32x128xf32>
    %cst = arith.constant dense<0.000000e+00> : vector<8x128xf32>
    %2 = tpu.matmul %0, %1, %cst {dimension_numbers = #tpu.dot_dimension_numbers<[1], [0], [0], [1], [0, 0, 1, 1], [], []>} : vector<8x32xf32>, vector<32x128xf32>, vector<8x128xf32> -> vector<8x128xf32>
    %c0_3 = arith.constant 0 : index
    %c0_4 = arith.constant 0 : index
    %3 = vector.load %arg2[%c0_3, %c0_4] : memref<1x128xf32, #tpu.memory_space<vmem>>, vector<1x128xf32>
    %4 = vector.broadcast %3 : vector<1x128xf32> to vector<8x128xf32>
    %5 = arith.addf %2, %4 : vector<8x128xf32>
    %cst_5 = arith.constant 0.000000e+00 : f32
    %6 = vector.broadcast %cst_5 : f32 to vector<8x128xf32>
    %7 = arith.maximumf %5, %6 : vector<8x128xf32>
    %cst_6 = arith.constant dense<0.000000e+00> : vector<128xf32>
    %8 = vector.multi_reduction <add>, %7, %cst_6 [0] : vector<8x128xf32> to vector<128xf32>
    %9 = vector.shape_cast %8 : vector<128xf32> to vector<1x128xf32>
    %cst_7 = arith.constant 8.000000e+00 : f32
    %10 = vector.broadcast %cst_7 : f32 to vector<1x128xf32>
    %11 = arith.divf %9, %10 : vector<1x128xf32>
    %12 = vector.broadcast %11 : vector<1x128xf32> to vector<8x128xf32>
    %13 = arith.subf %7, %12 : vector<8x128xf32>
    %14 = arith.mulf %13, %13 : vector<8x128xf32>
    %cst_8 = arith.constant dense<0.000000e+00> : vector<128xf32>
    %15 = vector.multi_reduction <add>, %14, %cst_8 [0] : vector<8x128xf32> to vector<128xf32>
    %16 = vector.shape_cast %15 : vector<128xf32> to vector<1x128xf32>
    %cst_9 = arith.constant 8.000000e+00 : f32
    %17 = vector.broadcast %cst_9 : f32 to vector<1x128xf32>
    %18 = arith.divf %16, %17 : vector<1x128xf32>
    %cst_10 = arith.constant 9.99999974E-6 : f32
    %19 = vector.broadcast %cst_10 : f32 to vector<1x128xf32>
    %20 = arith.addf %18, %19 : vector<1x128xf32>
    %21 = math.rsqrt %20 : vector<1x128xf32>
    %22 = vector.broadcast %21 : vector<1x128xf32> to vector<8x128xf32>
    %23 = arith.mulf %13, %22 : vector<8x128xf32>
    %c0_11 = arith.constant 0 : index
    %c0_12 = arith.constant 0 : index
    %24 = vector.load %arg3[%c0_11, %c0_12] : memref<1x128xf32, #tpu.memory_space<vmem>>, vector<1x128xf32>
    %25 = vector.broadcast %24 : vector<1x128xf32> to vector<8x128xf32>
    %26 = arith.mulf %23, %25 : vector<8x128xf32>
    %c0_13 = arith.constant 0 : index
    %c0_14 = arith.constant 0 : index
    %27 = vector.load %arg4[%c0_13, %c0_14] : memref<1x128xf32, #tpu.memory_space<vmem>>, vector<1x128xf32>
    %28 = vector.broadcast %27 : vector<1x128xf32> to vector<8x128xf32>
    %29 = arith.addf %26, %28 : vector<8x128xf32>
    %c0_15 = arith.constant 0 : index
    %c0_16 = arith.constant 0 : index
    %30 = vector.load %arg5[%c0_15, %c0_16] : memref<128x128xf32, #tpu.memory_space<vmem>>, vector<128x128xf32>
    %cst_17 = arith.constant dense<0.000000e+00> : vector<8x128xf32>
    %31 = tpu.matmul %29, %30, %cst_17 {dimension_numbers = #tpu.dot_dimension_numbers<[1], [0], [0], [1], [0, 0, 1, 1], [], []>} : vector<8x128xf32>, vector<128x128xf32>, vector<8x128xf32> -> vector<8x128xf32>
    %c0_18 = arith.constant 0 : index
    %c0_19 = arith.constant 0 : index
    %32 = vector.load %arg6[%c0_18, %c0_19] : memref<1x128xf32, #tpu.memory_space<vmem>>, vector<1x128xf32>
    %33 = vector.broadcast %32 : vector<1x128xf32> to vector<8x128xf32>
    %34 = arith.addf %31, %33 : vector<8x128xf32>
    %35 = vector.extract_strided_slice %34 {offsets = [0, 0], sizes = [8, 8], strides = [1, 1]} : vector<8x128xf32> to vector<8x8xf32>
    %c0_20 = arith.constant 0 : index
    %c0_21 = arith.constant 0 : index
    %36 = vector.load %arg10[%c0_20, %c0_21] : memref<8x8xf32, #tpu.memory_space<vmem>>, vector<8x8xf32>
    tpu.vector_store %arg10[%c0_20, %c0_21], %35 {strides = array<i32>} : memref<8x8xf32, #tpu.memory_space<vmem>>, vector<8x8xf32>,
    %cst_22 = arith.constant 0.000000e+00 : f32
    %37 = vector.broadcast %cst_22 : f32 to vector<8x128xf32>
    %38 = arith.maximumf %34, %37 : vector<8x128xf32>
    %c0_23 = arith.constant 0 : index
    %c0_24 = arith.constant 0 : index
    %39 = vector.load %arg7[%c0_23, %c0_24] : memref<128x128xf32, #tpu.memory_space<vmem>>, vector<128x128xf32>
    %cst_25 = arith.constant dense<0.000000e+00> : vector<8x128xf32>
    %40 = tpu.matmul %38, %39, %cst_25 {dimension_numbers = #tpu.dot_dimension_numbers<[1], [0], [0], [1], [0, 0, 1, 1], [], []>} : vector<8x128xf32>, vector<128x128xf32>, vector<8x128xf32> -> vector<8x128xf32>
    %c0_26 = arith.constant 0 : index
    %c0_27 = arith.constant 0 : index
    %41 = vector.load %arg8[%c0_26, %c0_27] : memref<1x128xf32, #tpu.memory_space<vmem>>, vector<1x128xf32>
    %42 = vector.broadcast %41 : vector<1x128xf32> to vector<8x128xf32>
    %43 = arith.addf %40, %42 : vector<8x128xf32>
    %44 = vector.extract_strided_slice %43 {offsets = [0, 0], sizes = [8, 32], strides = [1, 1]} : vector<8x128xf32> to vector<8x32xf32>
    %c0_28 = arith.constant 0 : index
    %c0_29 = arith.constant 0 : index
    %45 = vector.load %arg9[%c0_28, %c0_29] : memref<8x32xf32, #tpu.memory_space<vmem>>, vector<8x32xf32>
    tpu.vector_store %arg9[%c0_28, %c0_29], %44 {strides = array<i32>} : memref<8x32xf32, #tpu.memory_space<vmem>>, vector<8x32xf32>,
    return
  }
}

</mosaic_0001>

<llo_original>
// kernel: tpu_custom_call.1
$region0: #{tpu_custom_call.1}
  #allocation0 [shape = 'u32[]', space=smem, size = 0x4, offset = 0x4, fixed_abs, tag = 'smem constant byte address 0x4 - core index']
  #allocation1 [shape = 'u32[72,128]{1,0:T(1,128)}', space=vmem, size = 0x9000, scoped, tag = 'internal scratch']
  %s0 = inlined_call_operand.hbm [shape: f32[8,32], index: 0, kind: input, shape index: {}]
  %s1 = inlined_call_operand.hbm [shape: f32[32,128], index: 1, kind: input, shape index: {}]
  %s2 = inlined_call_operand.vmem [shape: f32[1,128], index: 2, kind: input, shape index: {}]
  %s3 = inlined_call_operand.vmem [shape: f32[1,128], index: 3, kind: input, shape index: {}]
  %s4 = inlined_call_operand.vmem [shape: f32[1,128], index: 4, kind: input, shape index: {}]
  %s5 = inlined_call_operand.hbm [shape: f32[128,128], index: 5, kind: input, shape index: {}]
  %s6 = inlined_call_operand.vmem [shape: f32[1,128], index: 6, kind: input, shape index: {}]
  %s7 = inlined_call_operand.hbm [shape: f32[128,128], index: 7, kind: input, shape index: {}]
  %s8 = inlined_call_operand.vmem [shape: f32[1,128], index: 8, kind: input, shape index: {}]
  %s9 = inlined_call_operand.hbm [shape: f32[8,32], index: 9, kind: output, shape index: {0}]
  %s10 = inlined_call_operand.hbm [shape: f32[8,8], index: 10, kind: output, shape index: {1}]
  %11 = xla_tuple %s9, %s10
  %s12 = sld [smem:[#allocation0]]
  $region70: #{tpu_custom_call.1} parent=0
    _
  %s14 = ssub.s32 1, %s12
  %s15 = scalar_select 0, %s14, %s12
  $region1: #{tpu_custom_call.1} parent=0
    #allocation2 [shape = 'u8[4096]{0}', space=vmem, size = 0x1000, scoped, tag = 'input window, operand 0, single buffered']
    #allocation3 [shape = 's32[1]{0}', space=sflag, size = 0x4, scoped, tag = 'scoped memory for tpu_custom_call.1']
    #allocation4 [shape = 's32[1]{0}', space=sflag, size = 0x4, scoped, tag = 'scoped memory for tpu_custom_call.1']
    #allocation5 [shape = 'u8[16384]{0}', space=vmem, size = 0x4000, scoped, tag = 'input window, operand 1, single buffered']
    #allocation6 [shape = 's32[1]{0}', space=sflag, size = 0x4, scoped, tag = 'scoped memory for tpu_custom_call.1']
    #allocation7 [shape = 'u8[65536]{0}', space=vmem, size = 0x10000, scoped, tag = 'input window, operand 5, single buffered']
    #allocation8 [shape = 'u8[65536]{0}', space=vmem, size = 0x10000, scoped, tag = 'input window, operand 7, single buffered']
    #allocation9 [shape = 's32[1]{0}', space=sflag, size = 0x4, scoped, tag = 'scoped memory for tpu_custom_call.1']
    #allocation10 [shape = 'u8[4096]{0}', space=vmem, size = 0x1000, scoped, tag = 'output window, operand 0, single buffered']
    #allocation11 [shape = 'u8[4096]{0}', space=vmem, size = 0x1000, scoped, tag = 'output window, operand 1, single buffered']
    #allocation12 [shape = 's32[1]{0}', space=sflag, size = 0x4, scoped, tag = 'scoped memory for tpu_custom_call.1']
    %16 = vsyncpa [#allocation3], 0
    %17 = vsyncpa [#allocation6], 0
    %18 = vsyncpa [#allocation9], 0
    %19 = vsyncpa [#allocation4], 0
    %20 = vsyncpa [#allocation12], 0
    // Predicated region
    $region2: #{tpu_custom_call.1} parent=1 // pred_check
      _
    $region3: #{tpu_custom_call.1} parent=1 // pred_check_branch
      %22 = sbr.rel (0) target = $region5
    $region4: #{tpu_custom_call.1} parent=1 // pred_region
      %24 = vsyncadd [#allocation3], 0
      %s26 = sshll.u32 %s0, 4
      %s27 = int_to_ptr.hbm [resolvable:$true] %s26
      %s28 = sshll.u32 [#allocation2], 4
      %s29 = int_to_ptr.vmem [resolvable:$true] %s28
      %31 = dma.hbm_to_vmem [thread:$0]  %s27, 128, %s29, [#allocation3]
    $region5: #{tpu_custom_call.1} parent=1 // pred_fallthru
      _
    // Predicated region
    $region6: #{tpu_custom_call.1} parent=1 // pred_check
      _
    $region7: #{tpu_custom_call.1} parent=1 // pred_check_branch
      %33 = sbr.rel (0) target = $region9
    $region8: #{tpu_custom_call.1} parent=1 // pred_region
      %35 = vsyncadd [#allocation6], 0
      %s36 = sshll.u32 %s1, 4
      %s37 = int_to_ptr.hbm [resolvable:$true] %s36
      %s38 = sshll.u32 [#allocation5], 4
      %s39 = int_to_ptr.vmem [resolvable:$true] %s38
      %44 = dma.hbm_to_vmem [thread:$0]  %s37, 512, %s39, [#allocation6], 128, 128, 8
    $region9: #{tpu_custom_call.1} parent=1 // pred_fallthru
      _
    // Predicated region
    $region10: #{tpu_custom_call.1} parent=1 // pred_check
      _
    $region11: #{tpu_custom_call.1} parent=1 // pred_check_branch
      %46 = sbr.rel (0) target = $region13
    $region12: #{tpu_custom_call.1} parent=1 // pred_region
      _
    $region13: #{tpu_custom_call.1} parent=1 // pred_fallthru
      _
    // Predicated region
    $region14: #{tpu_custom_call.1} parent=1 // pred_check
      _
    $region15: #{tpu_custom_call.1} parent=1 // pred_check_branch
      %48 = sbr.rel (0) target = $region17
    $region16: #{tpu_custom_call.1} parent=1 // pred_region
      _
    $region17: #{tpu_custom_call.1} parent=1 // pred_fallthru
      _
    // Predicated region
    $region18: #{tpu_custom_call.1} parent=1 // pred_check
      _
    $region19: #{tpu_custom_call.1} parent=1 // pred_check_branch
      %50 = sbr.rel (0) target = $region21
    $region20: #{tpu_custom_call.1} parent=1 // pred_region
      _
    $region21: #{tpu_custom_call.1} parent=1 // pred_fallthru
      _
    // Predicated region
    $region22: #{tpu_custom_call.1} parent=1 // pred_check
      _
    $region23: #{tpu_custom_call.1} parent=1 // pred_check_branch
      %52 = sbr.rel (0) target = $region25
    $region24: #{tpu_custom_call.1} parent=1 // pred_region
      %54 = vsyncadd [#allocation6], 0
      %s55 = sshll.u32 %s5, 4
      %s56 = int_to_ptr.hbm [resolvable:$true] %s55
      %s57 = sshll.u32 [#allocation7], 4
      %s58 = int_to_ptr.vmem [resolvable:$true] %s57
      %63 = dma.hbm_to_vmem [thread:$0]  %s56, 2048, %s58, [#allocation6], 128, 128, 8
    $region25: #{tpu_custom_call.1} parent=1 // pred_fallthru
      _
    // Predicated region
    $region26: #{tpu_custom_call.1} parent=1 // pred_check
      _
    $region27: #{tpu_custom_call.1} parent=1 // pred_check_branch
      %65 = sbr.rel (0) target = $region29
    $region28: #{tpu_custom_call.1} parent=1 // pred_region
      _
    $region29: #{tpu_custom_call.1} parent=1 // pred_fallthru
      _
    // Predicated region
    $region30: #{tpu_custom_call.1} parent=1 // pred_check
      _
    $region31: #{tpu_custom_call.1} parent=1 // pred_check_branch
      %67 = sbr.rel (0) target = $region33
    $region32: #{tpu_custom_call.1} parent=1 // pred_region
      %69 = vsyncadd [#allocation9], 0
      %s70 = sshll.u32 %s7, 4
      %s71 = int_to_ptr.hbm [resolvable:$true] %s70
      %s72 = sshll.u32 [#allocation8], 4
      %s73 = int_to_ptr.vmem [resolvable:$true] %s72
      %78 = dma.hbm_to_vmem [thread:$0]  %s71, 2048, %s73, [#allocation9], 128, 128, 8
    $region33: #{tpu_custom_call.1} parent=1 // pred_fallthru
      _
    // Predicated region
    $region34: #{tpu_custom_call.1} parent=1 // pred_check
      _
    $region35: #{tpu_custom_call.1} parent=1 // pred_check_branch
      %80 = sbr.rel (0) target = $region37
    $region36: #{tpu_custom_call.1} parent=1 // pred_region
      _
    $region37: #{tpu_custom_call.1} parent=1 // pred_fallthru
      _
    // Predicated region
    $region38: #{tpu_custom_call.1} parent=1 // pred_check
      _
    $region39: #{tpu_custom_call.1} parent=1 // pred_check_branch
      %82 = sbr.rel (0) target = $region41
    $region40: #{tpu_custom_call.1} parent=1 // pred_region
      %84 = dma.done [#allocation3], 128
    $region41: #{tpu_custom_call.1} parent=1 // pred_fallthru
      _
    // Predicated region
    $region42: #{tpu_custom_call.1} parent=1 // pred_check
      _
    $region43: #{tpu_custom_call.1} parent=1 // pred_check_branch
      %86 = sbr.rel (0) target = $region45
    $region44: #{tpu_custom_call.1} parent=1 // pred_region
      %88 = dma.done [#allocation6], 512
    $region45: #{tpu_custom_call.1} parent=1 // pred_fallthru
      _
    // Predicated region
    $region46: #{tpu_custom_call.1} parent=1 // pred_check
      _
    $region47: #{tpu_custom_call.1} parent=1 // pred_check_branch
      %90 = sbr.rel (0) target = $region49
    $region48: #{tpu_custom_call.1} parent=1 // pred_region
      %92 = dma.done [#allocation6], 2048
    $region49: #{tpu_custom_call.1} parent=1 // pred_fallthru
      _
    // Predicated region
    $region50: #{tpu_custom_call.1} parent=1 // pred_check
      _
    $region51: #{tpu_custom_call.1} parent=1 // pred_check_branch
      %94 = sbr.rel (0) target = $region53
    $region52: #{tpu_custom_call.1} parent=1 // pred_region
      %96 = dma.done [#allocation9], 2048
    $region53: #{tpu_custom_call.1} parent=1 // pred_fallthru
      _
    %v97 = vld [vmem:[#allocation2] sm:$0xff]
    %v98 = vld [vmem:[#allocation5] sm:$0xff]
    %v99 = vld [vmem:[#allocation5 + $0x8] sm:$0xff]
    %v100 = vld [vmem:[#allocation5 + $0x10] sm:$0xff]
    %v101 = vld [vmem:[#allocation5 + $0x18] sm:$0xff]
    %v102 = vld [vmem:[%s2] sm:$0x1]
    %v104 = vperm.slane %v102, 0
    %vm106 = vcmask 261120
    %v108 = vsel %vm106, %v97, 0
    %110 = vmatpush.msra.mxu0 0.0
    %111 = vmatpush.msra.mxu0 0.0
    %112 = vmatpush.msra.mxu0 0.0
    %113 = vmatpush.msra.mxu0 0.0
    %114 = vmatpush.msra.mxu0 0.0
    %115 = vmatpush.msra.mxu0 0.0
    %116 = vmatpush.msra.mxu0 0.0
    %117 = vmatpush.msra.mxu0 0.0
    %118 = vmatpush.msra.mxu0 0.0
    %119 = vmatpush.msra.mxu0 0.0
    %120 = vmatpush.msra.mxu0 0.0
    %121 = vmatpush.msra.mxu0 0.0
    %122 = vmatpush.msra.mxu0 %v101
    %123 = vmatpush.msra.mxu0 %v100
    %124 = vmatpush.msra.mxu0 %v99
    %125 = vmatpush.msra.mxu0 %v98
    %126 = vmatmul.f32.gmra.mxu0 %v108
    %v127 = vpop.f32.mrf.mxu0
    %v128 = vadd.f32 %v104, %v127
    %129 = vdwg.mxu0
    %v130 = vmax.f32 %v128, 0.0
    %v131 = vrot.slane %v130, 4
    %v132 = vadd.f32 %v130, %v131
    %v133 = vrot.slane %v132, 2
    %v134 = vadd.f32 %v132, %v133
    %v135 = vrot.slane %v134, 1
    %v136 = vadd.f32 %v134, %v135
    %v137 = vrcp.pop 8.0
    %v138 = vmul.f32 8.0, %v137
    %v139 = vsub.f32 1.0, %v138
    %v140 = vmul.f32 %v137, %v139
    %v141 = vadd.f32 %v137, %v140
    %vm142 = vweird.f32 %v137
    %v143 = vsel %vm142, %v137, %v141
    %v144 = vmul.f32 %v136, %v143
    %v145 = vsub.f32 %v130, %v144
    %v146 = vmul.f32 %v145, %v145
    %v147 = vrot.slane %v146, 4
    %v148 = vadd.f32 %v146, %v147
    %v149 = vrot.slane %v148, 2
    %v150 = vadd.f32 %v148, %v149
    %v151 = vrot.slane %v150, 1
    %v152 = vadd.f32 %v150, %v151
    %v153 = vmul.f32 %v152, %v143
    %v154 = vadd.f32 %v153, 1e-05
    %v155 = vrsqrt.pop %v154
    %v156 = vmul.f32 %v155, %v154
    %v157 = vmul.f32 %v156, %v155
    %v158 = vmul.f32 0.5, %v157
    %v159 = vsub.f32 1.5, %v158
    %v160 = vmul.f32 %v155, %v159
    %vm161 = vweird.f32 %v154
    %vm162 = vweird.f32 %v155
    %vm163 = vmor %vm161, %vm162
    %v164 = vsel %vm163, %v155, %v160
    %v165 = vmul.f32 %v145, %v164
    %v166 = vld [vmem:[%s3] sm:$0x1]
    %v168 = vperm.slane %v166, 0
    %v170 = vmul.f32 %v165, %v168
    %v171 = vld [vmem:[%s4] sm:$0x1]
    %v173 = vperm.slane %v171, 0
    %v175 = vadd.f32 %v170, %v173
    %v176 = vld [vmem:[#allocation7] sm:$0xff]
    %v177 = vld [vmem:[#allocation7 + $0x8] sm:$0xff]
    %v178 = vld [vmem:[#allocation7 + $0x10] sm:$0xff]
    %v179 = vld [vmem:[#allocation7 + $0x18] sm:$0xff]
    %v180 = vld [vmem:[#allocation7 + $0x20] sm:$0xff]
    %v181 = vld [vmem:[#allocation7 + $0x28] sm:$0xff]
    %v182 = vld [vmem:[#allocation7 + $0x30] sm:$0xff]
    %v183 = vld [vmem:[#allocation7 + $0x38] sm:$0xff]
    %v184 = vld [vmem:[#allocation7 + $0x40] sm:$0xff]
    %v185 = vld [vmem:[#allocation7 + $0x48] sm:$0xff]
    %v186 = vld [vmem:[#allocation7 + $0x50] sm:$0xff]
    %v187 = vld [vmem:[#allocation7 + $0x58] sm:$0xff]
    %v188 = vld [vmem:[#allocation7 + $0x60] sm:$0xff]
    %v189 = vld [vmem:[#allocation7 + $0x68] sm:$0xff]
    %v190 = vld [vmem:[#allocation7 + $0x70] sm:$0xff]
    %v191 = vld [vmem:[#allocation7 + $0x78] sm:$0xff]
    %v192 = vld [vmem:[%s6] sm:$0x1]
    %v194 = vperm.slane %v192, 0
    %196 = vmatpush.msra.mxu0 %v191
    %197 = vmatpush.msra.mxu0 %v190
    %198 = vmatpush.msra.mxu0 %v189
    %199 = vmatpush.msra.mxu0 %v188
    %200 = vmatpush.msra.mxu0 %v187
    %201 = vmatpush.msra.mxu0 %v186
    %202 = vmatpush.msra.mxu0 %v185
    %203 = vmatpush.msra.mxu0 %v184
    %204 = vmatpush.msra.mxu0 %v183
    %205 = vmatpush.msra.mxu0 %v182
    %206 = vmatpush.msra.mxu0 %v181
    %207 = vmatpush.msra.mxu0 %v180
    %208 = vmatpush.msra.mxu0 %v179
    %209 = vmatpush.msra.mxu0 %v178
    %210 = vmatpush.msra.mxu0 %v177
    %211 = vmatpush.msra.mxu0 %v176
    %212 = vmatmul.f32.gmra.mxu0 %v175
    %v213 = vpop.f32.mrf.mxu0
    %v214 = vadd.f32 %v194, %v213
    %215 = vdwg.mxu0
    %vm216 = vcmask 64512
    %217 = vst.msk [vmem:[#allocation11] sm:$0xff] %vm216, %v214
    %v218 = vmax.f32 %v214, 0.0
    %v219 = vld [vmem:[#allocation8] sm:$0xff]
    %v220 = vld [vmem:[#allocation8 + $0x8] sm:$0xff]
    %v221 = vld [vmem:[#allocation8 + $0x10] sm:$0xff]
    %v222 = vld [vmem:[#allocation8 + $0x18] sm:$0xff]
    %v223 = vld [vmem:[#allocation8 + $0x20] sm:$0xff]
    %v224 = vld [vmem:[#allocation8 + $0x28] sm:$0xff]
    %v225 = vld [vmem:[#allocation8 + $0x30] sm:$0xff]
    %v226 = vld [vmem:[#allocation8 + $0x38] sm:$0xff]
    %v227 = vld [vmem:[#allocation8 + $0x40] sm:$0xff]
    %v228 = vld [vmem:[#allocation8 + $0x48] sm:$0xff]
    %v229 = vld [vmem:[#allocation8 + $0x50] sm:$0xff]
    %v230 = vld [vmem:[#allocation8 + $0x58] sm:$0xff]
    %v231 = vld [vmem:[#allocation8 + $0x60] sm:$0xff]
    %v232 = vld [vmem:[#allocation8 + $0x68] sm:$0xff]
    %v233 = vld [vmem:[#allocation8 + $0x70] sm:$0xff]
    %v234 = vld [vmem:[#allocation8 + $0x78] sm:$0xff]
    %v235 = vld [vmem:[%s8] sm:$0x1]
    %v237 = vperm.slane %v235, 0
    %239 = vmatpush.msra.mxu0 %v234
    %240 = vmatpush.msra.mxu0 %v233
    %241 = vmatpush.msra.mxu0 %v232
    %242 = vmatpush.msra.mxu0 %v231
    %243 = vmatpush.msra.mxu0 %v230
    %244 = vmatpush.msra.mxu0 %v229
    %245 = vmatpush.msra.mxu0 %v228
    %246 = vmatpush.msra.mxu0 %v227
    %247 = vmatpush.msra.mxu0 %v226
    %248 = vmatpush.msra.mxu0 %v225
    %249 = vmatpush.msra.mxu0 %v224
    %250 = vmatpush.msra.mxu0 %v223
    %251 = vmatpush.msra.mxu0 %v222
    %252 = vmatpush.msra.mxu0 %v221
    %253 = vmatpush.msra.mxu0 %v220
    %254 = vmatpush.msra.mxu0 %v219
    %255 = vmatmul.f32.gmra.mxu0 %v218
    %v256 = vpop.f32.mrf.mxu0
    %v257 = vadd.f32 %v237, %v256
    %258 = vdwg.mxu0
    %259 = vst.msk [vmem:[#allocation10] sm:$0xff] %vm106, %v257
    // Predicated region
    $region54: #{tpu_custom_call.1} parent=1 // pred_check
      _
    $region55: #{tpu_custom_call.1} parent=1 // pred_check_branch
      %261 = sbr.rel (0) target = $region57
    $region56: #{tpu_custom_call.1} parent=1 // pred_region
      %263 = vsyncadd [#allocation4], 0
      %s265 = sshll.u32 [#allocation10], 4
      %s266 = int_to_ptr.vmem [resolvable:$true] %s265
      %s267 = sshll.u32 %s9, 4
      %s268 = int_to_ptr.hbm [resolvable:$true] %s267
      %270 = dma.vmem_to_hbm [thread:$0]  %s266, 128, %s268, [#allocation4]
    $region57: #{tpu_custom_call.1} parent=1 // pred_fallthru
      _
    // Predicated region
    $region58: #{tpu_custom_call.1} parent=1 // pred_check
      _
    $region59: #{tpu_custom_call.1} parent=1 // pred_check_branch
      %272 = sbr.rel (0) target = $region61
    $region60: #{tpu_custom_call.1} parent=1 // pred_region
      %274 = vsyncadd [#allocation12], 0
      %s276 = sshll.u32 [#allocation11], 4
      %s277 = int_to_ptr.vmem [resolvable:$true] %s276
      %s278 = sshll.u32 %s10, 4
      %s279 = int_to_ptr.hbm [resolvable:$true] %s278
      %281 = dma.vmem_to_hbm [thread:$0]  %s277, 128, %s279, [#allocation12]
    $region61: #{tpu_custom_call.1} parent=1 // pred_fallthru
      _
    // Predicated region
    $region62: #{tpu_custom_call.1} parent=1 // pred_check
      _
    $region63: #{tpu_custom_call.1} parent=1 // pred_check_branch
      %283 = sbr.rel (0) target = $region65
    $region64: #{tpu_custom_call.1} parent=1 // pred_region
      %285 = dma.done [#allocation4], 128
    $region65: #{tpu_custom_call.1} parent=1 // pred_fallthru
      _
    // Predicated region
    $region66: #{tpu_custom_call.1} parent=1 // pred_check
      _
    $region67: #{tpu_custom_call.1} parent=1 // pred_check_branch
      %287 = sbr.rel (0) target = $region69
    $region68: #{tpu_custom_call.1} parent=1 // pred_region
      %289 = dma.done [#allocation12], 128
    $region69: #{tpu_custom_call.1} parent=1 // pred_fallthru
      _
    %290 = vsyncpa [#allocation3], 1
    %291 = vsyncpa [#allocation6], 1
    %292 = vsyncpa [#allocation9], 1
    %293 = vsyncpa [#allocation4], 1
    %294 = vsyncpa [#allocation12], 1

</llo_original>
